<compile_context>
chip_gen: v6e
topology: v6e:2x2x1
jax: 0.10.0
libtpu: 0.0.40
codegen_flags: <defaults>
</compile_context>

<pallas_src>
import functools

import jax
import jax.numpy as jnp
from jax.experimental import pallas as pl
from jax.experimental.pallas import tpu as pltpu


def _dsconv_kernel(x_ref, wd_ref, wp_ref, bp_ref, o_ref, *, H, W, C, O, TH):
    # x_ref : (1, H, W, C)    un-padded NHWC image (resident across row tiles)
    # wd_ref: (9, C)          depthwise 3x3 weights, row k = dh*3 + dw
    # wp_ref: (C, O)          pointwise weights
    # bp_ref: (1, O)          effective bias (= b_pw + w_pw @ b_dw, folded in wrapper)
    # o_ref : (1, TH*W, O)    output row tile (flattened over (h, w))
    t = pl.program_id(1)
    nt = pl.num_programs(1)
    r0 = t * TH

    # ---- gather TH rows + 1-row halo; zero the halo rows at the image edges ----
    core = x_ref[0, pl.ds(r0, TH)]                                    # (TH, W, C)
    top = x_ref[0, pl.ds(jnp.maximum(r0 - 1, 0), 1)]                  # (1, W, C)
    bot = x_ref[0, pl.ds(jnp.minimum(r0 + TH, H - 1), 1)]             # (1, W, C)
    top = top * (t > 0).astype(top.dtype)
    bot = bot * (t < nt - 1).astype(bot.dtype)
    xt = jnp.concatenate([top, core, bot], axis=0)                    # (TH+2, W, C)

    # ---- hoisted width shifts: 3 column-shifted views instead of 9 slices ----
    zcol = jnp.zeros((TH + 2, 1, C), xt.dtype)
    cols = (
        jnp.concatenate([zcol, xt[:, : W - 1, :]], axis=1),   # dw = 0  (x[w-1], zero at left)
        xt,                                                   # dw = 1  (x[w])
        jnp.concatenate([xt[:, 1:, :], zcol], axis=1),        # dw = 2  (x[w+1], zero at right)
    )

    # ---- depthwise 3x3 (VPU); per-tap weight broadcasts hoisted out of the loop ----
    wd = wd_ref[...].astype(jnp.float32)                              # (9, C)
    w_planes = [wd[k:k + 1, :].reshape(1, 1, C) for k in range(9)]
    acc = jnp.zeros((TH, W, C), jnp.float32)
    for dh in range(3):
        for dw in range(3):
            acc = acc + cols[dw][dh:dh + TH].astype(jnp.float32) * w_planes[dh * 3 + dw]

    # ---- pointwise 1x1 on the MXU + folded bias ----
    flat = acc.reshape(TH * W, C)                                     # sublane-merge only
    out = jnp.dot(flat, wp_ref[...].astype(jnp.float32),
                  preferred_element_type=jnp.float32)                 # (TH*W, O)
    out = out + bp_ref[...].astype(jnp.float32)                       # (1, O) broadcasts
    o_ref[0] = out.astype(o_ref.dtype)


def _pick_row_tile(H, W, C, O, budget_bytes=2 * 1024 * 1024):
    """Largest row tile TH that divides H, keeps the output block sublane-aligned
    (TH % 8 == 0), gives >= 2 row tiles (so both v7x TensorCores get work even at
    batch 1), and whose f32 working set fits a conservative per-tile budget
    (sized with headroom for v7x's smaller VMEM)."""
    best = None
    for th in range(8, max(H // 2, 8) + 1, 8):
        if H % th != 0:
            continue
        # rough f32 working set: padded tile + 3 shifted copies + acc + out tile
        work = (4 * (th + 2) * W * C + th * W * C + th * W * O) * 4
        if work <= budget_bytes:
            best = th
    return best if best is not None else H   # fallback: whole image (always legal)


def depthwise_separable_conv(x_nchw, w_dw, b_dw, w_pw, b_pw):
    """x_nchw: (B, C, H, W); w_dw: (C, 1, 3, 3); b_dw: (C,);
       w_pw: (O, C, 1, 1);  b_pw: (O,).  Returns (B, O, H, W)."""
    B, C, H, W = x_nchw.shape
    O = w_pw.shape[0]

    # Layout glue (one XLA transpose): put channels on the lane axis.
    # NOTE: no jnp.pad any more -- the halo is built inside the kernel.
    x = jnp.transpose(x_nchw, (0, 2, 3, 1))                           # (B, H, W, C)
    wd = jnp.transpose(w_dw[:, 0, :, :], (1, 2, 0)).reshape(9, C)     # (9, C), k = dh*3+dw
    wp = jnp.transpose(w_pw[:, :, 0, 0], (1, 0))                      # (C, O)
    # Pointwise conv is linear -> fold the depthwise bias into the pointwise bias.
    bp = (b_pw + w_pw[:, :, 0, 0] @ b_dw).reshape(1, O)               # (1, O)

    TH = _pick_row_tile(H, W, C, O)
    nt = H // TH

    itemsize = x.dtype.itemsize
    cost = pl.CostEstimate(
        flops=B * H * W * (18 * C + 2 * C * O),
        transcendentals=0,
        bytes_accessed=B * H * W * (C + O) * itemsize + int(wd.size + wp.size + O) * 4,
    )

    kernel = functools.partial(_dsconv_kernel, H=H, W=W, C=C, O=O, TH=TH)
    out = pl.pallas_call(
        kernel,
        out_shape=jax.ShapeDtypeStruct((B, H * W, O), x_nchw.dtype),
        grid=(B, nt),
        in_specs=[
            # whole (un-padded) image stays resident across the row-tile axis
            pl.BlockSpec((1, H, W, C), lambda b, t: (b, 0, 0, 0)),
            pl.BlockSpec((9, C), lambda b, t: (0, 0)),
            pl.BlockSpec((C, O), lambda b, t: (0, 0)),
            pl.BlockSpec((1, O), lambda b, t: (0, 0)),
        ],
        out_specs=pl.BlockSpec((1, TH * W, O), lambda b, t: (b, t, 0)),
        compiler_params=pltpu.CompilerParams(
            dimension_semantics=("parallel", "parallel"),
            vmem_limit_bytes=32 * 1024 * 1024,
        ),
        cost_estimate=cost,
    )(x, wd, wp, bp)

    # (B, H*W, O) -> (B, H, W, O) is a free reshape; transpose back to NCHW.
    return jnp.transpose(out.reshape(B, H, W, O), (0, 3, 1, 2))


def _reference(x, w_dw, b_dw, w_pw, b_pw):
    """Pure-JAX reference matching nn.Conv2d(groups=C) -> nn.Conv2d(1x1)."""
    C = x.shape[1]
    y = jax.lax.conv_general_dilated(
        x, w_dw, window_strides=(1, 1), padding=((1, 1), (1, 1)),
        feature_group_count=C,
        dimension_numbers=("NCHW", "OIHW", "NCHW"))
    y = y + b_dw.reshape(1, C, 1, 1)
    z = jax.lax.conv_general_dilated(
        y, w_pw, window_strides=(1, 1), padding="VALID",
        dimension_numbers=("NCHW", "OIHW", "NCHW"))
    return z + b_pw.reshape(1, -1, 1, 1)


if __name__ == "__main__":
    key = jax.random.PRNGKey(0)
    k_x, k_wd, k_bd, k_wp, k_bp = jax.random.split(key, 5)

    B, C_in, C_out, H, W = 2, 4, 8, 16, 16

    x = jax.random.normal(k_x, (B, C_in, H, W), dtype=jnp.float32)
    # Deterministic synthetic parameters (shapes follow nn.Conv2d in __init__).
    w_dw = jax.random.normal(k_wd, (C_in, 1, 3, 3), dtype=jnp.float32) * 0.2
    b_dw = jax.random.normal(k_bd, (C_in,), dtype=jnp.float32) * 0.1
    w_pw = jax.random.normal(k_wp, (C_out, C_in, 1, 1), dtype=jnp.float32) * 0.2
    b_pw = jax.random.normal(k_bp, (C_out,), dtype=jnp.float32) * 0.1

    out = depthwise_separable_conv(x, w_dw, b_dw, w_pw, b_pw)
    out = jax.block_until_ready(out)

    ref = jax.block_until_ready(_reference(x, w_dw, b_dw, w_pw, b_pw))
    assert out.shape == (B, C_out, H, W), out.shape
    assert jnp.allclose(out, ref, atol=1e-4, rtol=1e-4), "mismatch vs reference"

    print("KERNEL_OK")
</pallas_src>

<mosaic_0001>
module attributes {stable_mosaic.version = 11 : i64} {
  func.func @_dsconv_kernel(%arg0: i32, %arg1: i32, %arg2: memref<1x16x16x4xf32, #tpu.memory_space<vmem>>, %arg3: memref<9x4xf32, #tpu.memory_space<vmem>>, %arg4: memref<4x8xf32, #tpu.memory_space<vmem>>, %arg5: memref<1x8xf32, #tpu.memory_space<vmem>>, %arg6: memref<1x128x8xf32, #tpu.memory_space<vmem>>) attributes {dimension_semantics = [#tpu.dimension_semantics<parallel>, #tpu.dimension_semantics<parallel>], iteration_bounds = array<i64: 2, 2>, scalar_prefetch = 0 : i64, scratch_operands = 0 : i64, tpu.core_type = #tpu.core_type<tc>, window_params = [{transform_indices = @transform_0, window_bounds = array<i64: 1, 16, 16, 4>}, {pipeline_mode = #tpu.pipeline_mode<synchronous>, transform_indices = @transform_1, window_bounds = array<i64: 9, 4>}, {pipeline_mode = #tpu.pipeline_mode<synchronous>, transform_indices = @transform_2, window_bounds = array<i64: 4, 8>}, {pipeline_mode = #tpu.pipeline_mode<synchronous>, transform_indices = @transform_3, window_bounds = array<i64: 1, 8>}, {transform_indices = @transform_4, window_bounds = array<i64: 1, 128, 8>}]} {
    %c8_i32 = arith.constant 8 : i32
    %0 = arith.muli %arg1, %c8_i32 : i32
    %c0 = arith.constant 0 : index
    %1 = arith.index_cast %0 : i32 to index
    %c0_0 = arith.constant 0 : index
    %c0_1 = arith.constant 0 : index
    %2 = vector.load %arg2[%c0, %1, %c0_0, %c0_1] : memref<1x16x16x4xf32, #tpu.memory_space<vmem>>, vector<1x8x16x4xf32>
    %3 = vector.shape_cast %2 : vector<1x8x16x4xf32> to vector<8x16x4xf32>
    %c1_i32 = arith.constant 1 : i32
    %4 = arith.subi %0, %c1_i32 : i32
    %c0_i32 = arith.constant 0 : i32
    %5 = arith.maxsi %4, %c0_i32 : i32
    %c0_2 = arith.constant 0 : index
    %6 = arith.index_cast %5 : i32 to index
    %c0_3 = arith.constant 0 : index
    %c0_4 = arith.constant 0 : index
    %7 = vector.load %arg2[%c0_2, %6, %c0_3, %c0_4] : memref<1x16x16x4xf32, #tpu.memory_space<vmem>>, vector<1x1x16x4xf32>
    %8 = vector.shape_cast %7 : vector<1x1x16x4xf32> to vector<1x16x4xf32>
    %c8_i32_5 = arith.constant 8 : i32
    %9 = arith.addi %0, %c8_i32_5 : i32
    %c15_i32 = arith.constant 15 : i32
    %10 = arith.minsi %9, %c15_i32 : i32
    %c0_6 = arith.constant 0 : index
    %11 = arith.index_cast %10 : i32 to index
    %c0_7 = arith.constant 0 : index
    %c0_8 = arith.constant 0 : index
    %12 = vector.load %arg2[%c0_6, %11, %c0_7, %c0_8] : memref<1x16x16x4xf32, #tpu.memory_space<vmem>>, vector<1x1x16x4xf32>
    %13 = vector.shape_cast %12 : vector<1x1x16x4xf32> to vector<1x16x4xf32>
    %c0_i32_9 = arith.constant 0 : i32
    %14 = arith.cmpi sgt, %arg1, %c0_i32_9 : i32
    %15 = arith.extui %14 : i1 to i32
    %16 = arith.sitofp %15 : i32 to f32
    %17 = vector.broadcast %16 : f32 to vector<1x16x4xf32>
    %18 = arith.mulf %8, %17 : vector<1x16x4xf32>
    %c1_i32_10 = arith.constant 1 : i32
    %19 = arith.cmpi slt, %arg1, %c1_i32_10 : i32
    %20 = arith.extui %19 : i1 to i32
    %21 = arith.sitofp %20 : i32 to f32
    %22 = vector.broadcast %21 : f32 to vector<1x16x4xf32>
    %23 = arith.mulf %13, %22 : vector<1x16x4xf32>
    %24 = tpu.concatenate %18, %3, %23 in 0 : vector<1x16x4xf32>, vector<8x16x4xf32>, vector<1x16x4xf32> -> vector<10x16x4xf32>
    %cst = arith.constant 0.000000e+00 : f32
    %25 = vector.broadcast %cst : f32 to vector<10x1x4xf32>
    %26 = vector.extract_strided_slice %24 {offsets = [0, 0, 0], sizes = [10, 15, 4], strides = [1, 1, 1]} : vector<10x16x4xf32> to vector<10x15x4xf32>
    %27 = tpu.concatenate %25, %26 in 1 : vector<10x1x4xf32>, vector<10x15x4xf32> -> vector<10x16x4xf32>
    %28 = vector.extract_strided_slice %24 {offsets = [0, 1, 0], sizes = [10, 15, 4], strides = [1, 1, 1]} : vector<10x16x4xf32> to vector<10x15x4xf32>
    %29 = tpu.concatenate %28, %25 in 1 : vector<10x15x4xf32>, vector<10x1x4xf32> -> vector<10x16x4xf32>
    %c0_11 = arith.constant 0 : index
    %c0_12 = arith.constant 0 : index
    %30 = vector.load %arg3[%c0_11, %c0_12] : memref<9x4xf32, #tpu.memory_space<vmem>>, vector<9x4xf32>
    %31 = vector.extract_strided_slice %30 {offsets = [0, 0], sizes = [1, 4], strides = [1, 1]} : vector<9x4xf32> to vector<1x4xf32>
    %32 = vector.shape_cast %31 : vector<1x4xf32> to vector<1x1x4xf32>
    %33 = vector.extract_strided_slice %30 {offsets = [1, 0], sizes = [1, 4], strides = [1, 1]} : vector<9x4xf32> to vector<1x4xf32>
    %34 = vector.shape_cast %33 : vector<1x4xf32> to vector<1x1x4xf32>
    %35 = vector.extract_strided_slice %30 {offsets = [2, 0], sizes = [1, 4], strides = [1, 1]} : vector<9x4xf32> to vector<1x4xf32>
    %36 = vector.shape_cast %35 : vector<1x4xf32> to vector<1x1x4xf32>
    %37 = vector.extract_strided_slice %30 {offsets = [3, 0], sizes = [1, 4], strides = [1, 1]} : vector<9x4xf32> to vector<1x4xf32>
    %38 = vector.shape_cast %37 : vector<1x4xf32> to vector<1x1x4xf32>
    %39 = vector.extract_strided_slice %30 {offsets = [4, 0], sizes = [1, 4], strides = [1, 1]} : vector<9x4xf32> to vector<1x4xf32>
    %40 = vector.shape_cast %39 : vector<1x4xf32> to vector<1x1x4xf32>
    %41 = vector.extract_strided_slice %30 {offsets = [5, 0], sizes = [1, 4], strides = [1, 1]} : vector<9x4xf32> to vector<1x4xf32>
    %42 = vector.shape_cast %41 : vector<1x4xf32> to vector<1x1x4xf32>
    %43 = vector.extract_strided_slice %30 {offsets = [6, 0], sizes = [1, 4], strides = [1, 1]} : vector<9x4xf32> to vector<1x4xf32>
    %44 = vector.shape_cast %43 : vector<1x4xf32> to vector<1x1x4xf32>
    %45 = vector.extract_strided_slice %30 {offsets = [7, 0], sizes = [1, 4], strides = [1, 1]} : vector<9x4xf32> to vector<1x4xf32>
    %46 = vector.shape_cast %45 : vector<1x4xf32> to vector<1x1x4xf32>
    %47 = vector.extract_strided_slice %30 {offsets = [8, 0], sizes = [1, 4], strides = [1, 1]} : vector<9x4xf32> to vector<1x4xf32>
    %48 = vector.shape_cast %47 : vector<1x4xf32> to vector<1x1x4xf32>
    %cst_13 = arith.constant 0.000000e+00 : f32
    %49 = vector.broadcast %cst_13 : f32 to vector<8x16x4xf32>
    %50 = vector.extract_strided_slice %27 {offsets = [0, 0, 0], sizes = [8, 16, 4], strides = [1, 1, 1]} : vector<10x16x4xf32> to vector<8x16x4xf32>
    %51 = vector.broadcast %32 : vector<1x1x4xf32> to vector<8x16x4xf32>
    %52 = arith.mulf %50, %51 : vector<8x16x4xf32>
    %53 = arith.addf %49, %52 : vector<8x16x4xf32>
    %54 = vector.extract_strided_slice %24 {offsets = [0, 0, 0], sizes = [8, 16, 4], strides = [1, 1, 1]} : vector<10x16x4xf32> to vector<8x16x4xf32>
    %55 = vector.broadcast %34 : vector<1x1x4xf32> to vector<8x16x4xf32>
    %56 = arith.mulf %54, %55 : vector<8x16x4xf32>
    %57 = arith.addf %53, %56 : vector<8x16x4xf32>
    %58 = vector.extract_strided_slice %29 {offsets = [0, 0, 0], sizes = [8, 16, 4], strides = [1, 1, 1]} : vector<10x16x4xf32> to vector<8x16x4xf32>
    %59 = vector.broadcast %36 : vector<1x1x4xf32> to vector<8x16x4xf32>
    %60 = arith.mulf %58, %59 : vector<8x16x4xf32>
    %61 = arith.addf %57, %60 : vector<8x16x4xf32>
    %62 = vector.extract_strided_slice %27 {offsets = [1, 0, 0], sizes = [8, 16, 4], strides = [1, 1, 1]} : vector<10x16x4xf32> to vector<8x16x4xf32>
    %63 = vector.broadcast %38 : vector<1x1x4xf32> to vector<8x16x4xf32>
    %64 = arith.mulf %62, %63 : vector<8x16x4xf32>
    %65 = arith.addf %61, %64 : vector<8x16x4xf32>
    %66 = vector.extract_strided_slice %24 {offsets = [1, 0, 0], sizes = [8, 16, 4], strides = [1, 1, 1]} : vector<10x16x4xf32> to vector<8x16x4xf32>
    %67 = vector.broadcast %40 : vector<1x1x4xf32> to vector<8x16x4xf32>
    %68 = arith.mulf %66, %67 : vector<8x16x4xf32>
    %69 = arith.addf %65, %68 : vector<8x16x4xf32>
    %70 = vector.extract_strided_slice %29 {offsets = [1, 0, 0], sizes = [8, 16, 4], strides = [1, 1, 1]} : vector<10x16x4xf32> to vector<8x16x4xf32>
    %71 = vector.broadcast %42 : vector<1x1x4xf32> to vector<8x16x4xf32>
    %72 = arith.mulf %70, %71 : vector<8x16x4xf32>
    %73 = arith.addf %69, %72 : vector<8x16x4xf32>
    %74 = vector.extract_strided_slice %27 {offsets = [2, 0, 0], sizes = [8, 16, 4], strides = [1, 1, 1]} : vector<10x16x4xf32> to vector<8x16x4xf32>
    %75 = vector.broadcast %44 : vector<1x1x4xf32> to vector<8x16x4xf32>
    %76 = arith.mulf %74, %75 : vector<8x16x4xf32>
    %77 = arith.addf %73, %76 : vector<8x16x4xf32>
    %78 = vector.extract_strided_slice %24 {offsets = [2, 0, 0], sizes = [8, 16, 4], strides = [1, 1, 1]} : vector<10x16x4xf32> to vector<8x16x4xf32>
    %79 = vector.broadcast %46 : vector<1x1x4xf32> to vector<8x16x4xf32>
    %80 = arith.mulf %78, %79 : vector<8x16x4xf32>
    %81 = arith.addf %77, %80 : vector<8x16x4xf32>
    %82 = vector.extract_strided_slice %29 {offsets = [2, 0, 0], sizes = [8, 16, 4], strides = [1, 1, 1]} : vector<10x16x4xf32> to vector<8x16x4xf32>
    %83 = vector.broadcast %48 : vector<1x1x4xf32> to vector<8x16x4xf32>
    %84 = arith.mulf %82, %83 : vector<8x16x4xf32>
    %85 = arith.addf %81, %84 : vector<8x16x4xf32>
    %86 = vector.shape_cast %85 : vector<8x16x4xf32> to vector<128x4xf32>
    %c0_14 = arith.constant 0 : index
    %c0_15 = arith.constant 0 : index
    %87 = vector.load %arg4[%c0_14, %c0_15] : memref<4x8xf32, #tpu.memory_space<vmem>>, vector<4x8xf32>
    %cst_16 = arith.constant dense<0.000000e+00> : vector<128x8xf32>
    %88 = tpu.matmul %86, %87, %cst_16 {dimension_numbers = #tpu.dot_dimension_numbers<[1], [0], [0], [1], [0, 0, 1, 1], [], []>} : vector<128x4xf32>, vector<4x8xf32>, vector<128x8xf32> -> vector<128x8xf32>
    %c0_17 = arith.constant 0 : index
    %c0_18 = arith.constant 0 : index
    %89 = vector.load %arg5[%c0_17, %c0_18] : memref<1x8xf32, #tpu.memory_space<vmem>>, vector<1x8xf32>
    %90 = vector.broadcast %89 : vector<1x8xf32> to vector<128x8xf32>
    %91 = arith.addf %88, %90 : vector<128x8xf32>
    %c0_19 = arith.constant 0 : index
    %c0_20 = arith.constant 0 : index
    %c0_21 = arith.constant 0 : index
    %92 = vector.load %arg6[%c0_19, %c0_20, %c0_21] : memref<1x128x8xf32, #tpu.memory_space<vmem>>, vector<1x128x8xf32>
    %93 = vector.shape_cast %92 : vector<1x128x8xf32> to vector<128x8xf32>
    %94 = vector.shape_cast %91 : vector<128x8xf32> to vector<1x128x8xf32>
    tpu.vector_store %arg6[%c0_19, %c0_20, %c0_21], %94 {strides = array<i32>} : memref<1x128x8xf32, #tpu.memory_space<vmem>>, vector<1x128x8xf32>,
    return
  }
  func.func @transform_0(%arg0: i32, %arg1: i32) -> (i32, i32, i32, i32) {
    %c0_i32 = arith.constant 0 : i32
    %c0_i32_0 = arith.constant 0 : i32
    %c0_i32_1 = arith.constant 0 : i32
    %c0_i32_2 = arith.constant 0 : i32
    return %arg0, %c0_i32, %c0_i32_0, %c0_i32_1 : i32, i32, i32, i32
  }
  func.func @transform_1(%arg0: i32, %arg1: i32) -> (i32, i32) {
    %c0_i32 = arith.constant 0 : i32
    %c0_i32_0 = arith.constant 0 : i32
    %c0_i32_1 = arith.constant 0 : i32
    return %c0_i32, %c0_i32_0 : i32, i32
  }
  func.func @transform_2(%arg0: i32, %arg1: i32) -> (i32, i32) {
    %c0_i32 = arith.constant 0 : i32
    %c0_i32_0 = arith.constant 0 : i32
    %c0_i32_1 = arith.constant 0 : i32
    return %c0_i32, %c0_i32_0 : i32, i32
  }
  func.func @transform_3(%arg0: i32, %arg1: i32) -> (i32, i32) {
    %c0_i32 = arith.constant 0 : i32
    %c0_i32_0 = arith.constant 0 : i32
    %c0_i32_1 = arith.constant 0 : i32
    return %c0_i32, %c0_i32_0 : i32, i32
  }
  func.func @transform_4(%arg0: i32, %arg1: i32) -> (i32, i32, i32) {
    %c0_i32 = arith.constant 0 : i32
    %c0_i32_0 = arith.constant 0 : i32
    return %arg0, %arg1, %c0_i32 : i32, i32, i32
  }
}

</mosaic_0001>

<llo_original>
// kernel: tpu_custom_call.1
$region0: #{tpu_custom_call.1}
  #allocation0 [shape = 'u32[]', space=smem, size = 0x4, offset = 0x4, fixed_abs, tag = 'smem constant byte address 0x4 - core index']
  #allocation1 [shape = 'u32[144,128]{1,0:T(1,128)}', space=vmem, size = 0x12000, scoped, tag = 'internal scratch']
  %s0 = inlined_call_operand.vmem [shape: f32[2,16,16,4], index: 0, kind: input, shape index: {}]
  %s1 = inlined_call_operand.vmem [shape: f32[9,4], index: 1, kind: input, shape index: {}]
  %s2 = inlined_call_operand.vmem [shape: f32[4,8], index: 2, kind: input, shape index: {}]
  %s3 = inlined_call_operand.vmem [shape: f32[1,8], index: 3, kind: input, shape index: {}]
  %s4 = inlined_call_operand.vmem [shape: f32[2,256,8], index: 4, kind: output, shape index: {}]
  %s5 = sld [smem:[#allocation0]]
  $region49: #{tpu_custom_call.1} parent=0
    _
  %s7 = ssub.s32 1, %s5
  %s8 = scalar_select 0, %s7, %s5
  loop: start=0, step=1, limit=6
  $region2: #{tpu_custom_call.1} parent=0 // loop_pre_header
    _
  $region3: #{tpu_custom_call.1} parent=0 // loop_header
    %s10 = sphi 0, %s14
    %p11 = scmp.ge.s32.totalorder %s10, 6
    %s17 = sphi 0, %s29
    %s18 = sphi 0, %s25
    %s19 = sphi 0, %s17
    %s20 = sphi 0, %s18
    %s21 = sphi 0, %s19
    %s22 = sphi 0, %s20
    %s32 = sphi 0, %s34
    %s35 = sphi 0, %s32
    %s36 = sphi 0, %s35
    %s52 = sphi 0, %s36
    %s56 = sphi 0, %s56
    %s58 = sphi 0, %s56
    %s59 = sphi 0, %s58
    %s73 = sphi 0, %s59
    %s77 = sphi 0, %s77
    %s79 = sphi 0, %s77
    %s80 = sphi 0, %s79
    %s94 = sphi 0, %s80
    %s98 = sphi 0, %s98
    %s100 = sphi 0, %s98
    %s101 = sphi 0, %s100
    %s115 = sphi 0, %s101
    %s123 = sphi 0, %s125
    %s126 = sphi 0, %s123
    %s127 = sphi 0, %s126
    %s143 = sphi 0, %s127
  $region4: #{tpu_custom_call.1} parent=0 // loop_header_branch
    %13 = sbr.rel (%p11) target = $region8
  $region5: #{tpu_custom_call.1} parent=0 // loop_body
    %s15 = ssub.s32 %s10, 1
    %s16 = ssub.s32 %s10, 2
    %s23 = sadd.s32 1, %s18
    %p24 = scmp.ge.s32.totalorder %s23, 2
    %s25 = scalar_select %p24, 0, %s23
    %s26 = sadd.s32 1, %s17
    %s27 = scalar_select %p24, %s26, %s17
    %p28 = scmp.ge.s32.totalorder %s27, 2
    %s29 = scalar_select %p28, 0, %s27
    %s30 = ssub.s32 %s17, %s29
    %p31 = scmp.eq.s32.totalorder %s30, 0
    %s33 = sadd.s32 %s32, 1
    %s34 = scalar_select %p31, %s32, %s33
    %p37 = pneg %p31
    %p38 = scmp.eq.s32.totalorder %s10, 3
    %p39 = por %p37, %p38
    %p40 = scmp.ne.s32.totalorder %s32, %s35
    %p41 = scmp.eq.s32.totalorder %s10, 0
    %p42 = por %p40, %p41
    %p43 = scmp.ne.s32.totalorder %s32, %s35
    %p44 = scmp.eq.s32.totalorder %s15, 3
    %p45 = por %p43, %p44
    %p46 = scmp.ne.s32.totalorder %s35, %s36
    %p47 = scmp.eq.s32.totalorder %s15, 0
    %p48 = por %p46, %p47
    %p49 = scmp.ne.s32.totalorder %s35, %s36
    %p50 = scmp.eq.s32.totalorder %s16, 3
    %p51 = por %p49, %p50
    %p53 = scmp.ne.s32.totalorder %s36, %s52
    %p54 = scmp.eq.s32.totalorder %s16, 0
    %p55 = por %p53, %p54
    %s57 = sadd.s32 %s56, 1
    %p60 = scmp.eq.s32.totalorder %s10, 3
    %p61 = scmp.ne.s32.totalorder %s56, %s58
    %p62 = scmp.eq.s32.totalorder %s10, 0
    %p63 = por %p61, %p62
    %p64 = scmp.ne.s32.totalorder %s56, %s58
    %p65 = scmp.eq.s32.totalorder %s15, 3
    %p66 = por %p64, %p65
    %p67 = scmp.ne.s32.totalorder %s58, %s59
    %p68 = scmp.eq.s32.totalorder %s15, 0
    %p69 = por %p67, %p68
    %p70 = scmp.ne.s32.totalorder %s58, %s59
    %p71 = scmp.eq.s32.totalorder %s16, 3
    %p72 = por %p70, %p71
    %p74 = scmp.ne.s32.totalorder %s59, %s73
    %p75 = scmp.eq.s32.totalorder %s16, 0
    %p76 = por %p74, %p75
    %s78 = sadd.s32 %s77, 1
    %p81 = scmp.eq.s32.totalorder %s10, 3
    %p82 = scmp.ne.s32.totalorder %s77, %s79
    %p83 = scmp.eq.s32.totalorder %s10, 0
    %p84 = por %p82, %p83
    %p85 = scmp.ne.s32.totalorder %s77, %s79
    %p86 = scmp.eq.s32.totalorder %s15, 3
    %p87 = por %p85, %p86
    %p88 = scmp.ne.s32.totalorder %s79, %s80
    %p89 = scmp.eq.s32.totalorder %s15, 0
    %p90 = por %p88, %p89
    %p91 = scmp.ne.s32.totalorder %s79, %s80
    %p92 = scmp.eq.s32.totalorder %s16, 3
    %p93 = por %p91, %p92
    %p95 = scmp.ne.s32.totalorder %s80, %s94
    %p96 = scmp.eq.s32.totalorder %s16, 0
    %p97 = por %p95, %p96
    %s99 = sadd.s32 %s98, 1
    %p102 = scmp.eq.s32.totalorder %s10, 3
    %p103 = scmp.ne.s32.totalorder %s98, %s100
    %p104 = scmp.eq.s32.totalorder %s10, 0
    %p105 = por %p103, %p104
    %p106 = scmp.ne.s32.totalorder %s98, %s100
    %p107 = scmp.eq.s32.totalorder %s15, 3
    %p108 = por %p106, %p107
    %p109 = scmp.ne.s32.totalorder %s100, %s101
    %p110 = scmp.eq.s32.totalorder %s15, 0
    %p111 = por %p109, %p110
    %p112 = scmp.ne.s32.totalorder %s100, %s101
    %p113 = scmp.eq.s32.totalorder %s16, 3
    %p114 = por %p112, %p113
    %p116 = scmp.ne.s32.totalorder %s101, %s115
    %p117 = scmp.eq.s32.totalorder %s16, 0
    %p118 = por %p116, %p117
    %s119 = ssub.s32 %s17, %s29
    %s120 = ssub.s32 %s18, %s25
    %s121 = sor.u32 %s119, %s120
    %p122 = scmp.eq.s32.totalorder %s121, 0
    %s124 = sadd.s32 %s123, 1
    %s125 = scalar_select %p122, %s123, %s124
    %p128 = pneg %p122
    %p129 = scmp.eq.s32.totalorder %s10, 3
    %p130 = por %p128, %p129
    %p131 = scmp.ne.s32.totalorder %s123, %s126
    %p132 = scmp.eq.s32.totalorder %s10, 0
    %p133 = por %p131, %p132
    %p134 = scmp.ne.s32.totalorder %s123, %s126
    %p135 = scmp.eq.s32.totalorder %s15, 3
    %p136 = por %p134, %p135
    %p137 = scmp.ne.s32.totalorder %s126, %s127
    %p138 = scmp.eq.s32.totalorder %s15, 0
    %p139 = por %p137, %p138
    %p140 = scmp.ne.s32.totalorder %s126, %s127
    %p141 = scmp.eq.s32.totalorder %s16, 3
    %p142 = por %p140, %p141
    %p144 = scmp.ne.s32.totalorder %s127, %s143
    %p145 = scmp.eq.s32.totalorder %s16, 0
    %p146 = por %p144, %p145
    %p147 = scmp.le.s32.totalorder 1, %s10
    %p148 = scmp.lt.s32.totalorder %s10, 5
    %p149 = pnand %p147, %p148
    %p150 = pneg %p149
    // Predicated region
    $region9: #{tpu_custom_call.1} parent=5 // pred_check
      _
    $region10: #{tpu_custom_call.1} parent=5 // pred_check_branch
      %152 = sbr.rel (%p149) target = $region12
    $region11: #{tpu_custom_call.1} parent=5 // pred_region
      %s153 = ssub.s32 %s10, 1
      // Predicated region
      $region13: #{tpu_custom_call.1} parent=11 // pred_check
        %p154 = pneg %p69
      $region14: #{tpu_custom_call.1} parent=11 // pred_check_branch
        %156 = sbr.rel (%p154) target = $region16
      $region15: #{tpu_custom_call.1} parent=11 // pred_region
        _
      $region16: #{tpu_custom_call.1} parent=11 // pred_fallthru
        _
      // Predicated region
      $region17: #{tpu_custom_call.1} parent=11 // pred_check
        %p157 = pneg %p90
      $region18: #{tpu_custom_call.1} parent=11 // pred_check_branch
        %159 = sbr.rel (%p157) target = $region20
      $region19: #{tpu_custom_call.1} parent=11 // pred_region
        _
      $region20: #{tpu_custom_call.1} parent=11 // pred_fallthru
        _
      // Predicated region
      $region21: #{tpu_custom_call.1} parent=11 // pred_check
        %p160 = pneg %p111
      $region22: #{tpu_custom_call.1} parent=11 // pred_check_branch
        %162 = sbr.rel (%p160) target = $region24
      $region23: #{tpu_custom_call.1} parent=11 // pred_region
        _
      $region24: #{tpu_custom_call.1} parent=11 // pred_fallthru
        _
    $region12: #{tpu_custom_call.1} parent=5 // pred_fallthru
      _
    %p163 = scmp.lt.s32.totalorder %s10, 4
    // Predicated region
    $region25: #{tpu_custom_call.1} parent=5 // pred_check
      %p164 = pneg %p163
    $region26: #{tpu_custom_call.1} parent=5 // pred_check_branch
      %166 = sbr.rel (%p164) target = $region28
    $region27: #{tpu_custom_call.1} parent=5 // pred_region
      // Predicated region
      $region29: #{tpu_custom_call.1} parent=27 // pred_check
        %p167 = pneg %p42
      $region30: #{tpu_custom_call.1} parent=27 // pred_check_branch
        %169 = sbr.rel (%p167) target = $region32
      $region31: #{tpu_custom_call.1} parent=27 // pred_region
        %p170 = scmp.lt.s32.totalorder %s17, 1
        %s171 = scalar_select %p170, %s17, 1
        %s172 = smul.addr %s171, 32
        %s173 = smul.addr %s172, 8
        %s174 = scalar_lea.vmem %s0, %s173
      $region32: #{tpu_custom_call.1} parent=27 // pred_fallthru
        _
    $region28: #{tpu_custom_call.1} parent=5 // pred_fallthru
      _
    %p175 = scmp.le.s32.totalorder 1, %s10
    %p176 = scmp.lt.s32.totalorder %s10, 5
    %p177 = pnand %p175, %p176
    %p178 = pneg %p177
    // Predicated region
    $region33: #{tpu_custom_call.1} parent=5 // pred_check
      _
    $region34: #{tpu_custom_call.1} parent=5 // pred_check_branch
      %180 = sbr.rel (%p177) target = $region36
    $region35: #{tpu_custom_call.1} parent=5 // pred_region
      %s181 = ssub.s32 %s10, 1
      %p182 = scmp.lt.s32.totalorder %s19, 1
      %s183 = scalar_select %p182, %s19, 1
      %s184 = smul.addr %s183, 32
      %s185 = smul.addr %s184, 8
      %s186 = scalar_lea.vmem %s0, %s185
      %p187 = pneg %p48
      %p188 = pneg %p45
      %p189 = pneg %p69
      %p190 = pneg %p66
      %p191 = pneg %p90
      %p192 = pneg %p87
      %p193 = pneg %p111
      %p194 = pneg %p108
      %p195 = pneg %p139
      %p196 = pneg %p136
      %s197 = smul.u32 16, %s20
      %p198 = scmp.lt.s32.totalorder %s19, 1
      %s199 = scalar_select %p198, %s19, 1
      %p200 = scmp.lt.s32.totalorder %s197, 31
      %s201 = scalar_select %p200, %s197, 31
      %s202 = smul.addr %s199, 32
      %s203 = sadd.s32 %s201, %s202
      %s204 = smul.addr %s203, 8
      %s205 = scalar_lea.vmem %s4, %s204
      %p206 = scmp.lt.s32.totalorder %s19, 1
      %s207 = scalar_select %p206, %s19, 1
      %s208 = smul.addr %s207, 32
      %s209 = smul.addr %s208, 8
      %s210 = scalar_lea.vmem %s0, %s209
      %s211 = smul.u32 16, %s20
      %p212 = scmp.lt.s32.totalorder %s19, 1
      %s213 = scalar_select %p212, %s19, 1
      %p214 = scmp.lt.s32.totalorder %s211, 31
      %s215 = scalar_select %p214, %s211, 31
      %s216 = smul.addr %s213, 32
      %s217 = sadd.s32 %s215, %s216
      %s218 = smul.addr %s217, 8
      %s219 = scalar_lea.vmem %s4, %s218
      %s220 = smul.u32 16, %s20
      %s221 = smul.u32 %s20, 8
      %s222 = smul.u32 %s221, 16
      %s223 = scalar_lea.vmem %s210, %s222
      %v224 = vld [vmem:[%s223] sm:$0xff]
      %v225 = vld [vmem:[%s223 + $0x8] sm:$0xff]
      %v226 = vld [vmem:[%s223 + $0x10] sm:$0xff]
      %v227 = vld [vmem:[%s223 + $0x18] sm:$0xff]
      %v228 = vld [vmem:[%s223 + $0x20] sm:$0xff]
      %v229 = vld [vmem:[%s223 + $0x28] sm:$0xff]
      %v230 = vld [vmem:[%s223 + $0x30] sm:$0xff]
      %v231 = vld [vmem:[%s223 + $0x38] sm:$0xff]
      %v232 = vld [vmem:[%s223 + $0x40] sm:$0xff]
      %v233 = vld [vmem:[%s223 + $0x48] sm:$0xff]
      %v234 = vld [vmem:[%s223 + $0x50] sm:$0xff]
      %v235 = vld [vmem:[%s223 + $0x58] sm:$0xff]
      %v236 = vld [vmem:[%s223 + $0x60] sm:$0xff]
      %v237 = vld [vmem:[%s223 + $0x68] sm:$0xff]
      %v238 = vld [vmem:[%s223 + $0x70] sm:$0xff]
      %v239 = vld [vmem:[%s223 + $0x78] sm:$0xff]
      %s240 = ssub.s32 %s221, 1
      %p241 = scmp.gt.s32.totalorder %s240, 0
      %s242 = scalar_select %p241, %s240, 0
      %s243 = smul.u32 %s242, 16
      %s244 = scalar_lea.vmem %s210, %s243
      %v245 = vld [vmem:[%s244] sm:$0xff]
      %v246 = vld [vmem:[%s244 + $0x8] sm:$0xff]
      %s247 = sadd.s32 %s221, 8
      %p248 = scmp.lt.s32.totalorder %s247, 15
      %s249 = scalar_select %p248, %s247, 15
      %s250 = smul.u32 %s249, 16
      %s251 = scalar_lea.vmem %s210, %s250
      %v252 = vld [vmem:[%s251] sm:$0xff]
      %v253 = vld [vmem:[%s251 + $0x8] sm:$0xff]
      %p254 = scmp.gt.s32.totalorder %s20, 0
      %s255 = scalar_select %p254, 1, 0
      %s256 = scvt.s32.f32 %s255
      %v257 = vstv %s256
      %v258 = vmul.f32 %v245, %v257
      %v259 = vmul.f32 %v246, %v257
      %p260 = scmp.lt.s32.totalorder %s20, 1
      %s261 = scalar_select %p260, 1, 0
      %s262 = scvt.s32.f32 %s261
      %v263 = vstv %s262
      %v264 = vmul.f32 %v252, %v263
      %v265 = vmul.f32 %v253, %v263
      %vm286 = vcmask 1040384
      %v287 = vrot.slane %v258, 7
      %v288 = vrot.slane %v259, 7
      %v289 = vsel %vm286, %v287, %v288
      %v290 = vrot.slane %v224, 7
      %v291 = vrot.slane %v225, 7
      %v292 = vsel %vm286, %v290, %v291
      %v293 = vrot.slane %v226, 7
      %v294 = vrot.slane %v227, 7
      %v295 = vsel %vm286, %v293, %v294
      %v296 = vrot.slane %v228, 7
      %v297 = vrot.slane %v229, 7
      %v298 = vsel %vm286, %v296, %v297
      %v299 = vrot.slane %v230, 7
      %v300 = vrot.slane %v231, 7
      %v301 = vsel %vm286, %v299, %v300
      %v302 = vrot.slane %v232, 7
      %v303 = vrot.slane %v233, 7
      %v304 = vsel %vm286, %v302, %v303
      %v305 = vrot.slane %v234, 7
      %v306 = vrot.slane %v235, 7
      %v307 = vsel %vm286, %v305, %v306
      %v308 = vrot.slane %v236, 7
      %v309 = vrot.slane %v237, 7
      %v310 = vsel %vm286, %v308, %v309
      %v311 = vrot.slane %v238, 7
      %v312 = vrot.slane %v239, 7
      %v313 = vsel %vm286, %v311, %v312
      %v314 = vrot.slane %v264, 7
      %v315 = vrot.slane %v265, 7
      %v316 = vsel %vm286, %v314, %v315
      %v337 = vsel %vm286, 0.0, %v287
      %v338 = vsel %vm286, 0.0, %v290
      %v339 = vsel %vm286, 0.0, %v293
      %v340 = vsel %vm286, 0.0, %v296
      %v341 = vsel %vm286, 0.0, %v299
      %v342 = vsel %vm286, 0.0, %v302
      %v343 = vsel %vm286, 0.0, %v305
      %v344 = vsel %vm286, 0.0, %v308
      %v345 = vsel %vm286, 0.0, %v311
      %v346 = vsel %vm286, 0.0, %v314
      %vm347 = vcmask 1046528
      %v348 = vrot.slane %v258, 1
      %v349 = vrot.slane %v259, 1
      %v350 = vsel %vm347, %v348, %v349
      %v351 = vrot.slane %v224, 1
      %v352 = vrot.slane %v225, 1
      %v353 = vsel %vm347, %v351, %v352
      %v354 = vrot.slane %v226, 1
      %v355 = vrot.slane %v227, 1
      %v356 = vsel %vm347, %v354, %v355
      %v357 = vrot.slane %v228, 1
      %v358 = vrot.slane %v229, 1
      %v359 = vsel %vm347, %v357, %v358
      %v360 = vrot.slane %v230, 1
      %v361 = vrot.slane %v231, 1
      %v362 = vsel %vm347, %v360, %v361
      %v363 = vrot.slane %v232, 1
      %v364 = vrot.slane %v233, 1
      %v365 = vsel %vm347, %v363, %v364
      %v366 = vrot.slane %v234, 1
      %v367 = vrot.slane %v235, 1
      %v368 = vsel %vm347, %v366, %v367
      %v369 = vrot.slane %v236, 1
      %v370 = vrot.slane %v237, 1
      %v371 = vsel %vm347, %v369, %v370
      %v372 = vrot.slane %v238, 1
      %v373 = vrot.slane %v239, 1
      %v374 = vsel %vm347, %v372, %v373
      %v375 = vrot.slane %v264, 1
      %v376 = vrot.slane %v265, 1
      %v377 = vsel %vm347, %v375, %v376
      %v398 = vsel %vm347, %v349, 0.0
      %v399 = vsel %vm347, %v352, 0.0
      %v400 = vsel %vm347, %v355, 0.0
      %v401 = vsel %vm347, %v358, 0.0
      %v402 = vsel %vm347, %v361, 0.0
      %v403 = vsel %vm347, %v364, 0.0
      %v404 = vsel %vm347, %v367, 0.0
      %v405 = vsel %vm347, %v370, 0.0
      %v406 = vsel %vm347, %v373, 0.0
      %v407 = vsel %vm347, %v376, 0.0
      %v408 = vld [vmem:[%s1] sm:$0xff]
      %v409 = vld [vmem:[%s1 + $0x8] sm:$0x1]
      %v410 = vlaneseq
      %v411 = vshrl.u32 %v410, 7
      %v412 = vsub.s32 0, %v411
      %v413 = vrot.slane %v408, %v412
      %v414 = vmul.f32 %v337, %v413
      %v415 = vmul.f32 %v289, %v413
      %v416 = vmul.f32 %v338, %v413
      %v417 = vmul.f32 %v292, %v413
      %v418 = vmul.f32 %v339, %v413
      %v419 = vmul.f32 %v295, %v413
      %v420 = vmul.f32 %v340, %v413
      %v421 = vmul.f32 %v298, %v413
      %v422 = vmul.f32 %v341, %v413
      %v423 = vmul.f32 %v301, %v413
      %v424 = vmul.f32 %v342, %v413
      %v425 = vmul.f32 %v304, %v413
      %v426 = vmul.f32 %v343, %v413
      %v427 = vmul.f32 %v307, %v413
      %v428 = vmul.f32 %v344, %v413
      %v429 = vmul.f32 %v310, %v413
      %v430 = vadd.f32 %v414, 0.0
      %v431 = vadd.f32 %v415, 0.0
      %v432 = vadd.f32 %v416, 0.0
      %v433 = vadd.f32 %v417, 0.0
      %v434 = vadd.f32 %v418, 0.0
      %v435 = vadd.f32 %v419, 0.0
      %v436 = vadd.f32 %v420, 0.0
      %v437 = vadd.f32 %v421, 0.0
      %v438 = vadd.f32 %v422, 0.0
      %v439 = vadd.f32 %v423, 0.0
      %v440 = vadd.f32 %v424, 0.0
      %v441 = vadd.f32 %v425, 0.0
      %v442 = vadd.f32 %v426, 0.0
      %v443 = vadd.f32 %v427, 0.0
      %v444 = vadd.f32 %v428, 0.0
      %v445 = vadd.f32 %v429, 0.0
      %v446 = vlaneseq
      %v447 = vshrl.u32 %v446, 7
      %v448 = vsub.s32 1, %v447
      %v449 = vrot.slane %v408, %v448
      %v450 = vmul.f32 %v258, %v449
      %v451 = vmul.f32 %v259, %v449
      %v452 = vmul.f32 %v224, %v449
      %v453 = vmul.f32 %v225, %v449
      %v454 = vmul.f32 %v226, %v449
      %v455 = vmul.f32 %v227, %v449
      %v456 = vmul.f32 %v228, %v449
      %v457 = vmul.f32 %v229, %v449
      %v458 = vmul.f32 %v230, %v449
      %v459 = vmul.f32 %v231, %v449
      %v460 = vmul.f32 %v232, %v449
      %v461 = vmul.f32 %v233, %v449
      %v462 = vmul.f32 %v234, %v449
      %v463 = vmul.f32 %v235, %v449
      %v464 = vmul.f32 %v236, %v449
      %v465 = vmul.f32 %v237, %v449
      %v466 = vadd.f32 %v430, %v450
      %v467 = vadd.f32 %v431, %v451
      %v468 = vadd.f32 %v432, %v452
      %v469 = vadd.f32 %v433, %v453
      %v470 = vadd.f32 %v434, %v454
      %v471 = vadd.f32 %v435, %v455
      %v472 = vadd.f32 %v436, %v456
      %v473 = vadd.f32 %v437, %v457
      %v474 = vadd.f32 %v438, %v458
      %v475 = vadd.f32 %v439, %v459
      %v476 = vadd.f32 %v440, %v460
      %v477 = vadd.f32 %v441, %v461
      %v478 = vadd.f32 %v442, %v462
      %v479 = vadd.f32 %v443, %v463
      %v480 = vadd.f32 %v444, %v464
      %v481 = vadd.f32 %v445, %v465
      %v482 = vlaneseq
      %v483 = vshrl.u32 %v482, 7
      %v484 = vsub.s32 2, %v483
      %v485 = vrot.slane %v408, %v484
      %v486 = vmul.f32 %v350, %v485
      %v487 = vmul.f32 %v398, %v485
      %v488 = vmul.f32 %v353, %v485
      %v489 = vmul.f32 %v399, %v485
      %v490 = vmul.f32 %v356, %v485
      %v491 = vmul.f32 %v400, %v485
      %v492 = vmul.f32 %v359, %v485
      %v493 = vmul.f32 %v401, %v485
      %v494 = vmul.f32 %v362, %v485
      %v495 = vmul.f32 %v402, %v485
      %v496 = vmul.f32 %v365, %v485
      %v497 = vmul.f32 %v403, %v485
      %v498 = vmul.f32 %v368, %v485
      %v499 = vmul.f32 %v404, %v485
      %v500 = vmul.f32 %v371, %v485
      %v501 = vmul.f32 %v405, %v485
      %v502 = vadd.f32 %v466, %v486
      %v503 = vadd.f32 %v467, %v487
      %v504 = vadd.f32 %v468, %v488
      %v505 = vadd.f32 %v469, %v489
      %v506 = vadd.f32 %v470, %v490
      %v507 = vadd.f32 %v471, %v491
      %v508 = vadd.f32 %v472, %v492
      %v509 = vadd.f32 %v473, %v493
      %v510 = vadd.f32 %v474, %v494
      %v511 = vadd.f32 %v475, %v495
      %v512 = vadd.f32 %v476, %v496
      %v513 = vadd.f32 %v477, %v497
      %v514 = vadd.f32 %v478, %v498
      %v515 = vadd.f32 %v479, %v499
      %v516 = vadd.f32 %v480, %v500
      %v517 = vadd.f32 %v481, %v501
      %v518 = vlaneseq
      %v519 = vshrl.u32 %v518, 7
      %v520 = vsub.s32 3, %v519
      %v521 = vrot.slane %v408, %v520
      %v522 = vmul.f32 %v338, %v521
      %v523 = vmul.f32 %v292, %v521
      %v524 = vmul.f32 %v339, %v521
      %v525 = vmul.f32 %v295, %v521
      %v526 = vmul.f32 %v340, %v521
      %v527 = vmul.f32 %v298, %v521
      %v528 = vmul.f32 %v341, %v521
      %v529 = vmul.f32 %v301, %v521
      %v530 = vmul.f32 %v342, %v521
      %v531 = vmul.f32 %v304, %v521
      %v532 = vmul.f32 %v343, %v521
      %v533 = vmul.f32 %v307, %v521
      %v534 = vmul.f32 %v344, %v521
      %v535 = vmul.f32 %v310, %v521
      %v536 = vmul.f32 %v345, %v521
      %v537 = vmul.f32 %v313, %v521
      %v538 = vadd.f32 %v502, %v522
      %v539 = vadd.f32 %v503, %v523
      %v540 = vadd.f32 %v504, %v524
      %v541 = vadd.f32 %v505, %v525
      %v542 = vadd.f32 %v506, %v526
      %v543 = vadd.f32 %v507, %v527
      %v544 = vadd.f32 %v508, %v528
      %v545 = vadd.f32 %v509, %v529
      %v546 = vadd.f32 %v510, %v530
      %v547 = vadd.f32 %v511, %v531
      %v548 = vadd.f32 %v512, %v532
      %v549 = vadd.f32 %v513, %v533
      %v550 = vadd.f32 %v514, %v534
      %v551 = vadd.f32 %v515, %v535
      %v552 = vadd.f32 %v516, %v536
      %v553 = vadd.f32 %v517, %v537
      %v554 = vlaneseq
      %v555 = vshrl.u32 %v554, 7
      %v556 = vsub.s32 4, %v555
      %v557 = vrot.slane %v408, %v556
      %v558 = vmul.f32 %v224, %v557
      %v559 = vmul.f32 %v225, %v557
      %v560 = vmul.f32 %v226, %v557
      %v561 = vmul.f32 %v227, %v557
      %v562 = vmul.f32 %v228, %v557
      %v563 = vmul.f32 %v229, %v557
      %v564 = vmul.f32 %v230, %v557
      %v565 = vmul.f32 %v231, %v557
      %v566 = vmul.f32 %v232, %v557
      %v567 = vmul.f32 %v233, %v557
      %v568 = vmul.f32 %v234, %v557
      %v569 = vmul.f32 %v235, %v557
      %v570 = vmul.f32 %v236, %v557
      %v571 = vmul.f32 %v237, %v557
      %v572 = vmul.f32 %v238, %v557
      %v573 = vmul.f32 %v239, %v557
      %v574 = vadd.f32 %v538, %v558
      %v575 = vadd.f32 %v539, %v559
      %v576 = vadd.f32 %v540, %v560
      %v577 = vadd.f32 %v541, %v561
      %v578 = vadd.f32 %v542, %v562
      %v579 = vadd.f32 %v543, %v563
      %v580 = vadd.f32 %v544, %v564
      %v581 = vadd.f32 %v545, %v565
      %v582 = vadd.f32 %v546, %v566
      %v583 = vadd.f32 %v547, %v567
      %v584 = vadd.f32 %v548, %v568
      %v585 = vadd.f32 %v549, %v569
      %v586 = vadd.f32 %v550, %v570
      %v587 = vadd.f32 %v551, %v571
      %v588 = vadd.f32 %v552, %v572
      %v589 = vadd.f32 %v553, %v573
      %v590 = vlaneseq
      %v591 = vshrl.u32 %v590, 7
      %v592 = vsub.s32 5, %v591
      %v593 = vrot.slane %v408, %v592
      %v594 = vmul.f32 %v353, %v593
      %v595 = vmul.f32 %v399, %v593
      %v596 = vmul.f32 %v356, %v593
      %v597 = vmul.f32 %v400, %v593
      %v598 = vmul.f32 %v359, %v593
      %v599 = vmul.f32 %v401, %v593
      %v600 = vmul.f32 %v362, %v593
      %v601 = vmul.f32 %v402, %v593
      %v602 = vmul.f32 %v365, %v593
      %v603 = vmul.f32 %v403, %v593
      %v604 = vmul.f32 %v368, %v593
      %v605 = vmul.f32 %v404, %v593
      %v606 = vmul.f32 %v371, %v593
      %v607 = vmul.f32 %v405, %v593
      %v608 = vmul.f32 %v374, %v593
      %v609 = vmul.f32 %v406, %v593
      %v610 = vadd.f32 %v574, %v594
      %v611 = vadd.f32 %v575, %v595
      %v612 = vadd.f32 %v576, %v596
      %v613 = vadd.f32 %v577, %v597
      %v614 = vadd.f32 %v578, %v598
      %v615 = vadd.f32 %v579, %v599
      %v616 = vadd.f32 %v580, %v600
      %v617 = vadd.f32 %v581, %v601
      %v618 = vadd.f32 %v582, %v602
      %v619 = vadd.f32 %v583, %v603
      %v620 = vadd.f32 %v584, %v604
      %v621 = vadd.f32 %v585, %v605
      %v622 = vadd.f32 %v586, %v606
      %v623 = vadd.f32 %v587, %v607
      %v624 = vadd.f32 %v588, %v608
      %v625 = vadd.f32 %v589, %v609
      %v626 = vlaneseq
      %v627 = vshrl.u32 %v626, 7
      %v628 = vsub.s32 6, %v627
      %v629 = vrot.slane %v408, %v628
      %v630 = vmul.f32 %v339, %v629
      %v631 = vmul.f32 %v295, %v629
      %v632 = vmul.f32 %v340, %v629
      %v633 = vmul.f32 %v298, %v629
      %v634 = vmul.f32 %v341, %v629
      %v635 = vmul.f32 %v301, %v629
      %v636 = vmul.f32 %v342, %v629
      %v637 = vmul.f32 %v304, %v629
      %v638 = vmul.f32 %v343, %v629
      %v639 = vmul.f32 %v307, %v629
      %v640 = vmul.f32 %v344, %v629
      %v641 = vmul.f32 %v310, %v629
      %v642 = vmul.f32 %v345, %v629
      %v643 = vmul.f32 %v313, %v629
      %v644 = vmul.f32 %v346, %v629
      %v645 = vmul.f32 %v316, %v629
      %v646 = vadd.f32 %v610, %v630
      %v647 = vadd.f32 %v611, %v631
      %v648 = vadd.f32 %v612, %v632
      %v649 = vadd.f32 %v613, %v633
      %v650 = vadd.f32 %v614, %v634
      %v651 = vadd.f32 %v615, %v635
      %v652 = vadd.f32 %v616, %v636
      %v653 = vadd.f32 %v617, %v637
      %v654 = vadd.f32 %v618, %v638
      %v655 = vadd.f32 %v619, %v639
      %v656 = vadd.f32 %v620, %v640
      %v657 = vadd.f32 %v621, %v641
      %v658 = vadd.f32 %v622, %v642
      %v659 = vadd.f32 %v623, %v643
      %v660 = vadd.f32 %v624, %v644
      %v661 = vadd.f32 %v625, %v645
      %v662 = vlaneseq
      %v663 = vshrl.u32 %v662, 7
      %v664 = vsub.s32 7, %v663
      %v665 = vrot.slane %v408, %v664
      %v666 = vmul.f32 %v226, %v665
      %v667 = vmul.f32 %v227, %v665
      %v668 = vmul.f32 %v228, %v665
      %v669 = vmul.f32 %v229, %v665
      %v670 = vmul.f32 %v230, %v665
      %v671 = vmul.f32 %v231, %v665
      %v672 = vmul.f32 %v232, %v665
      %v673 = vmul.f32 %v233, %v665
      %v674 = vmul.f32 %v234, %v665
      %v675 = vmul.f32 %v235, %v665
      %v676 = vmul.f32 %v236, %v665
      %v677 = vmul.f32 %v237, %v665
      %v678 = vmul.f32 %v238, %v665
      %v679 = vmul.f32 %v239, %v665
      %v680 = vmul.f32 %v264, %v665
      %v681 = vmul.f32 %v265, %v665
      %v682 = vadd.f32 %v646, %v666
      %v683 = vadd.f32 %v647, %v667
      %v684 = vadd.f32 %v648, %v668
      %v685 = vadd.f32 %v649, %v669
      %v686 = vadd.f32 %v650, %v670
      %v687 = vadd.f32 %v651, %v671
      %v688 = vadd.f32 %v652, %v672
      %v689 = vadd.f32 %v653, %v673
      %v690 = vadd.f32 %v654, %v674
      %v691 = vadd.f32 %v655, %v675
      %v692 = vadd.f32 %v656, %v676
      %v693 = vadd.f32 %v657, %v677
      %v694 = vadd.f32 %v658, %v678
      %v695 = vadd.f32 %v659, %v679
      %v696 = vadd.f32 %v660, %v680
      %v697 = vadd.f32 %v661, %v681
      %v698 = vlaneseq
      %v699 = vshrl.u32 %v698, 7
      %v700 = vsub.s32 0, %v699
      %v701 = vrot.slane %v409, %v700
      %v702 = vmul.f32 %v356, %v701
      %v703 = vmul.f32 %v400, %v701
      %v704 = vmul.f32 %v359, %v701
      %v705 = vmul.f32 %v401, %v701
      %v706 = vmul.f32 %v362, %v701
      %v707 = vmul.f32 %v402, %v701
      %v708 = vmul.f32 %v365, %v701
      %v709 = vmul.f32 %v403, %v701
      %v710 = vmul.f32 %v368, %v701
      %v711 = vmul.f32 %v404, %v701
      %v712 = vmul.f32 %v371, %v701
      %v713 = vmul.f32 %v405, %v701
      %v714 = vmul.f32 %v374, %v701
      %v715 = vmul.f32 %v406, %v701
      %v716 = vmul.f32 %v377, %v701
      %v717 = vmul.f32 %v407, %v701
      %v718 = vadd.f32 %v682, %v702
      %v719 = vadd.f32 %v683, %v703
      %v720 = vadd.f32 %v684, %v704
      %v721 = vadd.f32 %v685, %v705
      %v722 = vadd.f32 %v686, %v706
      %v723 = vadd.f32 %v687, %v707
      %v724 = vadd.f32 %v688, %v708
      %v725 = vadd.f32 %v689, %v709
      %v726 = vadd.f32 %v690, %v710
      %v727 = vadd.f32 %v691, %v711
      %v728 = vadd.f32 %v692, %v712
      %v729 = vadd.f32 %v693, %v713
      %v730 = vadd.f32 %v694, %v714
      %v731 = vadd.f32 %v695, %v715
      %v732 = vadd.f32 %v696, %v716
      %v733 = vadd.f32 %v697, %v717
      %v734 = vld [vmem:[%s2] sm:$0xf]
      %v735 = vld [vmem:[%s3] sm:$0x1]
      %v737 = vlaneseq
      %v738 = vshrl.u32 %v737, 7
      %v739 = vsub.s32 0, %v738
      %v740 = vrot.slane %v735, %v739
      %vm742 = vcmask 31744
      %v744 = vsel %vm742, %v718, 0
      %v747 = vsel %vm742, %v719, 0
      %v750 = vsel %vm742, %v720, 0
      %v753 = vsel %vm742, %v721, 0
      %v756 = vsel %vm742, %v722, 0
      %v759 = vsel %vm742, %v723, 0
      %v762 = vsel %vm742, %v724, 0
      %v765 = vsel %vm742, %v725, 0
      %v768 = vsel %vm742, %v726, 0
      %v771 = vsel %vm742, %v727, 0
      %v774 = vsel %vm742, %v728, 0
      %v777 = vsel %vm742, %v729, 0
      %v780 = vsel %vm742, %v730, 0
      %v783 = vsel %vm742, %v731, 0
      %v786 = vsel %vm742, %v732, 0
      %v789 = vsel %vm742, %v733, 0
      %vm791 = vcmask 1043456
      %v793 = vsel %vm791, %v734, 0
      %795 = vmatprep.subr.mxu0 0.0
      %796 = vmatpush1.msra.mxu0 0.0
      %797 = vmatprep.subr.mxu0 0.0
      %798 = vmatpush1.msra.mxu0 0.0
      %799 = vmatprep.subr.mxu0 0.0
      %800 = vmatpush1.msra.mxu0 0.0
      %801 = vmatprep.subr.mxu0 0.0
      %802 = vmatpush1.msra.mxu0 0.0
      %803 = vmatprep.subr.mxu0 0.0
      %804 = vmatpush1.msra.mxu0 0.0
      %805 = vmatprep.subr.mxu0 0.0
      %806 = vmatpush1.msra.mxu0 0.0
      %807 = vmatprep.subr.mxu0 0.0
      %808 = vmatpush1.msra.mxu0 0.0
      %809 = vmatprep.subr.mxu0 0.0
      %810 = vmatpush1.msra.mxu0 0.0
      %811 = vmatprep.subr.mxu0 0.0
      %812 = vmatpush1.msra.mxu0 0.0
      %813 = vmatprep.subr.mxu0 0.0
      %814 = vmatpush1.msra.mxu0 0.0
      %815 = vmatprep.subr.mxu0 0.0
      %816 = vmatpush1.msra.mxu0 0.0
      %817 = vmatprep.subr.mxu0 0.0
      %818 = vmatpush1.msra.mxu0 0.0
      %819 = vmatprep.subr.mxu0 0.0
      %820 = vmatpush1.msra.mxu0 0.0
      %821 = vmatprep.subr.mxu0 0.0
      %822 = vmatpush1.msra.mxu0 0.0
      %823 = vmatprep.subr.mxu0 0.0
      %824 = vmatpush1.msra.mxu0 0.0
      %825 = vmatprep.subr.mxu0 0.0
      %826 = vmatpush1.msra.mxu0 %v793
      %827 = vmatprep.subr.mxu0 0.0
      %828 = vmatpush2.msra.mxu0 0.0
      %829 = vmatprep.subr.mxu0 0.0
      %830 = vmatpush2.msra.mxu0 0.0
      %831 = vmatprep.subr.mxu0 0.0
      %832 = vmatpush2.msra.mxu0 0.0
      %833 = vmatprep.subr.mxu0 0.0
      %834 = vmatpush2.msra.mxu0 0.0
      %835 = vmatprep.subr.mxu0 0.0
      %836 = vmatpush2.msra.mxu0 0.0
      %837 = vmatprep.subr.mxu0 0.0
      %838 = vmatpush2.msra.mxu0 0.0
      %839 = vmatprep.subr.mxu0 0.0
      %840 = vmatpush2.msra.mxu0 0.0
      %841 = vmatprep.subr.mxu0 0.0
      %842 = vmatpush2.msra.mxu0 0.0
      %843 = vmatprep.subr.mxu0 0.0
      %844 = vmatpush2.msra.mxu0 0.0
      %845 = vmatprep.subr.mxu0 0.0
      %846 = vmatpush2.msra.mxu0 0.0
      %847 = vmatprep.subr.mxu0 0.0
      %848 = vmatpush2.msra.mxu0 0.0
      %849 = vmatprep.subr.mxu0 0.0
      %850 = vmatpush2.msra.mxu0 0.0
      %851 = vmatprep.subr.mxu0 0.0
      %852 = vmatpush2.msra.mxu0 0.0
      %853 = vmatprep.subr.mxu0 0.0
      %854 = vmatpush2.msra.mxu0 0.0
      %855 = vmatprep.subr.mxu0 0.0
      %856 = vmatpush2.msra.mxu0 0.0
      %857 = vmatprep.subr.mxu0 0.0
      %858 = vmatpush2.msra.mxu0 0.0
      %859 = vmatprep.mubr.f32.mxu0 0.0
      %860 = vmatmul.mubr.f32.gmra.mxu0 %v744
      %v861 = vpop.f32.mrf.mxu0
      %v862 = vadd.f32 %v740, %v861
      %v863 = vpop.f32.mrf.mxu0
      %864 = vmatprep.mubr.f32.mxu0 0.0
      %865 = vmatmul.mubr.f32.gmra.mxu0 %v747
      %v866 = vpop.f32.mrf.mxu0
      %v867 = vadd.f32 %v740, %v866
      %v868 = vpop.f32.mrf.mxu0
      %869 = vmatprep.mubr.f32.mxu0 0.0
      %870 = vmatmul.mubr.f32.gmra.mxu0 %v750
      %v871 = vpop.f32.mrf.mxu0
      %v872 = vadd.f32 %v740, %v871
      %v873 = vpop.f32.mrf.mxu0
      %874 = vmatprep.mubr.f32.mxu0 0.0
      %875 = vmatmul.mubr.f32.gmra.mxu0 %v753
      %v876 = vpop.f32.mrf.mxu0
      %v877 = vadd.f32 %v740, %v876
      %v878 = vpop.f32.mrf.mxu0
      %879 = vmatprep.mubr.f32.mxu0 0.0
      %880 = vmatmul.mubr.f32.gmra.mxu0 %v756
      %v881 = vpop.f32.mrf.mxu0
      %v882 = vadd.f32 %v740, %v881
      %v883 = vpop.f32.mrf.mxu0
      %884 = vmatprep.mubr.f32.mxu0 0.0
      %885 = vmatmul.mubr.f32.gmra.mxu0 %v759
      %v886 = vpop.f32.mrf.mxu0
      %v887 = vadd.f32 %v740, %v886
      %v888 = vpop.f32.mrf.mxu0
      %889 = vmatprep.mubr.f32.mxu0 0.0
      %890 = vmatmul.mubr.f32.gmra.mxu0 %v762
      %v891 = vpop.f32.mrf.mxu0
      %v892 = vadd.f32 %v740, %v891
      %v893 = vpop.f32.mrf.mxu0
      %894 = vmatprep.mubr.f32.mxu0 0.0
      %895 = vmatmul.mubr.f32.gmra.mxu0 %v765
      %v896 = vpop.f32.mrf.mxu0
      %v897 = vadd.f32 %v740, %v896
      %v898 = vpop.f32.mrf.mxu0
      %899 = vmatprep.mubr.f32.mxu0 0.0
      %900 = vmatmul.mubr.f32.gmra.mxu0 %v768
      %v901 = vpop.f32.mrf.mxu0
      %v902 = vadd.f32 %v740, %v901
      %v903 = vpop.f32.mrf.mxu0
      %904 = vmatprep.mubr.f32.mxu0 0.0
      %905 = vmatmul.mubr.f32.gmra.mxu0 %v771
      %v906 = vpop.f32.mrf.mxu0
      %v907 = vadd.f32 %v740, %v906
      %v908 = vpop.f32.mrf.mxu0
      %909 = vmatprep.mubr.f32.mxu0 0.0
      %910 = vmatmul.mubr.f32.gmra.mxu0 %v774
      %v911 = vpop.f32.mrf.mxu0
      %v912 = vadd.f32 %v740, %v911
      %v913 = vpop.f32.mrf.mxu0
      %914 = vmatprep.mubr.f32.mxu0 0.0
      %915 = vmatmul.mubr.f32.gmra.mxu0 %v777
      %v916 = vpop.f32.mrf.mxu0
      %v917 = vadd.f32 %v740, %v916
      %v918 = vpop.f32.mrf.mxu0
      %919 = vmatprep.mubr.f32.mxu0 0.0
      %920 = vmatmul.mubr.f32.gmra.mxu0 %v780
      %v921 = vpop.f32.mrf.mxu0
      %v922 = vadd.f32 %v740, %v921
      %v923 = vpop.f32.mrf.mxu0
      %924 = vmatprep.mubr.f32.mxu0 0.0
      %925 = vmatmul.mubr.f32.gmra.mxu0 %v783
      %v926 = vpop.f32.mrf.mxu0
      %v927 = vadd.f32 %v740, %v926
      %v928 = vpop.f32.mrf.mxu0
      %929 = vmatprep.mubr.f32.mxu0 0.0
      %930 = vmatmul.mubr.f32.gmra.mxu0 %v786
      %v931 = vpop.f32.mrf.mxu0
      %v932 = vadd.f32 %v740, %v931
      %v933 = vpop.f32.mrf.mxu0
      %934 = vmatprep.mubr.f32.mxu0 0.0
      %935 = vmatmul.mubr.f32.gmra.mxu0 %v789
      %v936 = vpop.f32.mrf.mxu0
      %v937 = vadd.f32 %v740, %v936
      %v938 = vpop.f32.mrf.mxu0
      %939 = vdwg.mxu0
      %vm940 = vcmask 64512
      %941 = vst.msk [vmem:[%s219] sm:$0xff] %vm940, %v862
      %942 = vst.msk [vmem:[%s219 + $0x8] sm:$0xff] %vm940, %v867
      %943 = vst.msk [vmem:[%s219 + $0x10] sm:$0xff] %vm940, %v872
      %944 = vst.msk [vmem:[%s219 + $0x18] sm:$0xff] %vm940, %v877
      %945 = vst.msk [vmem:[%s219 + $0x20] sm:$0xff] %vm940, %v882
      %946 = vst.msk [vmem:[%s219 + $0x28] sm:$0xff] %vm940, %v887
      %947 = vst.msk [vmem:[%s219 + $0x30] sm:$0xff] %vm940, %v892
      %948 = vst.msk [vmem:[%s219 + $0x38] sm:$0xff] %vm940, %v897
      %949 = vst.msk [vmem:[%s219 + $0x40] sm:$0xff] %vm940, %v902
      %950 = vst.msk [vmem:[%s219 + $0x48] sm:$0xff] %vm940, %v907
      %951 = vst.msk [vmem:[%s219 + $0x50] sm:$0xff] %vm940, %v912
      %952 = vst.msk [vmem:[%s219 + $0x58] sm:$0xff] %vm940, %v917
      %953 = vst.msk [vmem:[%s219 + $0x60] sm:$0xff] %vm940, %v922
      %954 = vst.msk [vmem:[%s219 + $0x68] sm:$0xff] %vm940, %v927
      %955 = vst.msk [vmem:[%s219 + $0x70] sm:$0xff] %vm940, %v932
      %956 = vst.msk [vmem:[%s219 + $0x78] sm:$0xff] %vm940, %v937
      %s957 = smul.u32 16, %s20
      %p958 = scmp.lt.s32.totalorder %s19, 1
      %s959 = scalar_select %p958, %s19, 1
      %p960 = scmp.lt.s32.totalorder %s957, 31
      %s961 = scalar_select %p960, %s957, 31
      %s962 = smul.addr %s959, 32
      %s963 = sadd.s32 %s961, %s962
      %s964 = smul.addr %s963, 8
      %s965 = scalar_lea.vmem %s4, %s964
      // Predicated region
      $region37: #{tpu_custom_call.1} parent=35 // pred_check
        %p966 = pneg %p136
      $region38: #{tpu_custom_call.1} parent=35 // pred_check_branch
        %968 = sbr.rel (%p966) target = $region40
      $region39: #{tpu_custom_call.1} parent=35 // pred_region
        %s969 = smul.u32 16, %s20
      $region40: #{tpu_custom_call.1} parent=35 // pred_fallthru
        _
    $region36: #{tpu_custom_call.1} parent=5 // pred_fallthru
      _
    %p970 = scmp.le.s32.totalorder 2, %s10
    // Predicated region
    $region41: #{tpu_custom_call.1} parent=5 // pred_check
      %p971 = pneg %p970
    $region42: #{tpu_custom_call.1} parent=5 // pred_check_branch
      %973 = sbr.rel (%p971) target = $region44
    $region43: #{tpu_custom_call.1} parent=5 // pred_region
      %s974 = ssub.s32 %s10, 2
      // Predicated region
      $region45: #{tpu_custom_call.1} parent=43 // pred_check
        %p975 = pneg %p142
      $region46: #{tpu_custom_call.1} parent=43 // pred_check_branch
        %977 = sbr.rel (%p975) target = $region48
      $region47: #{tpu_custom_call.1} parent=43 // pred_region
        %s978 = smul.u32 16, %s22
        %p979 = scmp.lt.s32.totalorder %s21, 1
        %s980 = scalar_select %p979, %s21, 1
        %p981 = scmp.lt.s32.totalorder %s978, 31
        %s982 = scalar_select %p981, %s978, 31
        %s983 = smul.addr %s980, 32
        %s984 = sadd.s32 %s982, %s983
        %s985 = smul.addr %s984, 8
        %s986 = scalar_lea.vmem %s4, %s985
      $region48: #{tpu_custom_call.1} parent=43 // pred_fallthru
        _
    $region44: #{tpu_custom_call.1} parent=5 // pred_fallthru
      _
  $region6: #{tpu_custom_call.1} parent=0 // loop_footer
    %s14 = sadd.s32 1, %s10
  $region7: #{tpu_custom_call.1} parent=0 // loop_footer_branch
    %9 = sbr.rel target = $region3
  $region8: #{tpu_custom_call.1} parent=0 // loop_exit
    _

</llo_original>
